<compile_context>
chip_gen: v7x
topology: tpu7x:2x2x1
jax: 0.10.0
libtpu: 0.0.40
codegen_flags: <defaults>
</compile_context>

<pallas_src>
import functools
import math

import jax
import jax.numpy as jnp
from jax import lax
from jax.experimental import pallas as pl
from jax.experimental.pallas import tpu as pltpu


# ---------------------------------------------------------------------------
# Single fused forward kernel (everything x/u-dependent lives here)
# ---------------------------------------------------------------------------
def _fused_forward(x, u, train_rows, a_inv_v, *,
                   lengthscale, outputscale, beta_mean, beta_cov):
    """train_rows: (D, N) = train_x^T;  a_inv_v: (N, N+1) = [A^-1 | A^-1 y]."""
    x = x.astype(jnp.float32)                       # (M, D)
    u = u.astype(jnp.float32)                       # (M,)
    m, d = x.shape
    n = train_rows.shape[1]
    inv_two_ls2 = 0.5 / float(lengthscale * lengthscale)
    os_ = float(outputscale)
    b_mean = float(beta_mean)
    b_cov = float(beta_cov)

    # Both orientations of the query/control block; u costs no extra DMA.
    xu = jnp.concatenate([x, u[:, None]], axis=1)          # (M, D+1)
    xu_t = jnp.concatenate([x.T, u[None, :]], axis=0)      # (D+1, M)

    def kernel(tr_ref, ainv_ref, xu_ref, xut_ref, out_ref):
        tr = tr_ref[...]                 # (D, N)   train coords, one row per dim
        xuv = xu_ref[...]                # (M, D+1) [x | u] as columns
        xut = xut_ref[...]               # (D+1, M) [x^T ; u] as rows

        # ---- scaled RBF K(x, train): (M, N), direct per-dim differences (VPU) ----
        dlt = xuv[:, 0:1] - tr[0:1, :]
        sq_xt = dlt * dlt
        for dd in range(1, d):
            dlt = xuv[:, dd:dd + 1] - tr[dd:dd + 1, :]
            sq_xt = sq_xt + dlt * dlt
        k_xt = os_ * jnp.exp(-sq_xt * inv_two_ls2)

        # ---- scaled RBF K(x, x): (M, M); diagonal distance is exactly zero ----
        dlt = xuv[:, 0:1] - xut[0:1, :]
        sq_xx = dlt * dlt
        for dd in range(1, d):
            dlt = xuv[:, dd:dd + 1] - xut[dd:dd + 1, :]
            sq_xx = sq_xx + dlt * dlt
        k_xx = os_ * jnp.exp(-sq_xx * inv_two_ls2)

        # ---- alpha GP posterior: ONE MXU matmul yields both
        #      B = K_xt A^-1 (cols 0..N-1) and mean = K_xt A^-1 y (col N) ----
        b_aug = jnp.dot(k_xt, ainv_ref[...],
                        preferred_element_type=jnp.float32)             # (M, N+1)
        quad = lax.dot_general(b_aug[:, :n], k_xt,
                               dimension_numbers=(((1,), (1,)), ((), ())),
                               preferred_element_type=jnp.float32)      # (M, M)
        a_cov = k_xx - quad
        a_mean = b_aug[:, n:]                                           # (M, 1)

        # ---- combine with the (analytic, constant) beta GP posterior ----
        u_col = xuv[:, d:]               # (M, 1)
        u_row = xut[d:, :]               # (1, M)
        ridx = lax.broadcasted_iota(jnp.int32, (m, m), 0)
        cidx = lax.broadcasted_iota(jnp.int32, (m, m), 1)
        jitter = jnp.where(ridx == cidx, jnp.float32(1e-8), jnp.float32(0.0))

        out_ref[:, :m] = (u_col * u_row) * b_cov + a_cov + jitter       # cov block
        out_ref[:, m:] = a_mean + b_mean * u_col                        # mean column

    vmem = pl.BlockSpec(memory_space=pltpu.MemorySpace.VMEM)
    out = pl.pallas_call(
        kernel,
        out_shape=jax.ShapeDtypeStruct((m, m + 1), jnp.float32),
        in_specs=[vmem] * 4,
        out_specs=vmem,
    )(train_rows, a_inv_v, xu, xu_t)
    # NOTE: at these KB-scale sizes a single ungridded call is optimal.  If N/M
    # ever grow, add a grid (N-reduction axis last, "parallel" on the others),
    # pad M to multiples of 128 for lane-dense stores, feed a_inv to the MXU in
    # bf16, and set pltpu.CompilerParams(vmem_limit_bytes=...) -- v7x has only
    # 64 MiB physical VMEM and v5e only 16 MiB default scoped.
    return out[:, m], out[:, :m]


# ---------------------------------------------------------------------------
# Linearizing_Control_3 equivalent
# ---------------------------------------------------------------------------
class LinearizingControl3:
    def __init__(self, train_x, train_u, train_y):
        f32 = jnp.float32
        self.train_x = jnp.concatenate(train_x, axis=0).astype(f32)   # (N, D)
        self.train_u = jnp.concatenate(train_u, axis=0).astype(f32)   # stored; unused in forward (matches reference)
        self.train_y = jnp.concatenate(train_y, axis=0).astype(f32)   # (N,)
        n = self.train_x.shape[0]

        # gpytorch default hyperparameters (raw params 0 -> softplus(0) = ln 2,
        # GaussianLikelihood noise lower bound 1e-4); model assumed untrained.
        sp0 = math.log(2.0)
        self.alpha_lengthscale = sp0
        self.alpha_outputscale = sp0
        self.alpha_noise = sp0 + 1e-4
        self.beta_mean_const = 0.0
        self.beta_kernel_const = sp0
        self.beta_noise = sp0 + 1e-4

        # ---- training-only precompute (hoisted out of forward) ----
        t = self.train_x
        y = self.train_y
        diff = t[:, None, :] - t[None, :, :]
        sq_tt = jnp.sum(diff * diff, axis=-1)                          # exact zero diag
        k_tt = self.alpha_outputscale * jnp.exp(
            -sq_tt / (2.0 * self.alpha_lengthscale ** 2))
        a_mat = k_tt + self.alpha_noise * jnp.eye(n, dtype=f32)
        # TODO(synk): Cholesky factorization / triangular solve has no clean Pallas
        # primitive; this O(N^3) solve runs once at construction time in jax.scipy.
        cho = jax.scipy.linalg.cho_factor(a_mat, lower=True)
        a_inv = jax.scipy.linalg.cho_solve(cho, jnp.eye(n, dtype=f32))  # (N, N)
        v = jax.scipy.linalg.cho_solve(cho, y)                          # (N,) = A^-1 y

        # Packed kernel constants: train coords lane-major, and A^-1 augmented
        # with v so the posterior mean comes out of the B = K_xt A^-1 matmul.
        self.train_rows = t.T                                           # (D, N)
        self.a_inv_v = jnp.concatenate([a_inv, v[:, None]], axis=1)     # (N, N+1)

        # beta GP (ConstantMean + ConstantKernel): posterior mean/cov are constant,
        # so they collapse to two scalars computed once here.
        c = self.beta_kernel_const
        a_b = c * jnp.ones((n, n), f32) + self.beta_noise * jnp.eye(n, dtype=f32)
        cho_b = jax.scipy.linalg.cho_factor(a_b, lower=True)
        s_y = jax.scipy.linalg.cho_solve(cho_b, y - self.beta_mean_const)
        s_1 = jax.scipy.linalg.cho_solve(cho_b, jnp.ones((n,), f32))
        self.beta_mean_scalar = float(self.beta_mean_const + c * jnp.sum(s_y))
        self.beta_cov_scalar = float(c - c * c * jnp.sum(s_1))

        self._forward_fn = jax.jit(functools.partial(
            _fused_forward,
            lengthscale=self.alpha_lengthscale,
            outputscale=self.alpha_outputscale,
            beta_mean=self.beta_mean_scalar,
            beta_cov=self.beta_cov_scalar))

    def forward(self, x, u):
        return self._forward_fn(jnp.asarray(x, jnp.float32),
                                jnp.asarray(u, jnp.float32),
                                self.train_rows, self.a_inv_v)

    __call__ = forward

    def y_ref(self, x, u):
        return self.forward(x, u)[0]


# ---------------------------------------------------------------------------
# Pure-JAX reference (mirrors the full gpytorch math, no Pallas) for validation
# ---------------------------------------------------------------------------
def _reference_forward(model, x, u):
    f32 = jnp.float32
    t = model.train_x
    y = model.train_y
    n = t.shape[0]
    m = x.shape[0]
    ls = model.alpha_lengthscale
    os_ = model.alpha_outputscale

    def rbf(a, b):
        sq = (jnp.sum(a * a, axis=1)[:, None] + jnp.sum(b * b, axis=1)[None, :]
              - 2.0 * a @ b.T)
        return os_ * jnp.exp(-jnp.maximum(sq, 0.0) / (2.0 * ls * ls))

    a_mat = rbf(t, t) + model.alpha_noise * jnp.eye(n, dtype=f32)
    cho = jax.scipy.linalg.cho_factor(a_mat, lower=True)
    k_xt = rbf(x, t)
    k_xx = rbf(x, x)
    a_mean = k_xt @ jax.scipy.linalg.cho_solve(cho, y)
    a_cov = k_xx - k_xt @ jax.scipy.linalg.cho_solve(cho, k_xt.T)

    c = model.beta_kernel_const
    a_b = c * jnp.ones((n, n), f32) + model.beta_noise * jnp.eye(n, dtype=f32)
    cho_b = jax.scipy.linalg.cho_factor(a_b, lower=True)
    kb_xt = c * jnp.ones((m, n), f32)
    b_mean = kb_xt @ jax.scipy.linalg.cho_solve(cho_b, y - model.beta_mean_const) \
        + model.beta_mean_const
    b_cov = c * jnp.ones((m, m), f32) - kb_xt @ jax.scipy.linalg.cho_solve(cho_b, kb_xt.T)

    mean = a_mean + b_mean * u
    cov = u[None, :] * b_cov * u[:, None] + a_cov + 1e-8 * jnp.eye(m, dtype=f32)
    return mean, cov


if __name__ == "__main__":
    key = jax.random.PRNGKey(0)
    ks = jax.random.split(key, 8)
    D = 2          # state dimension
    n_seg = 8      # points per training segment (two segments -> 16 train points)
    M = 8          # number of query points

    train_x = [jax.random.normal(ks[0], (n_seg, D), jnp.float32),
               jax.random.normal(ks[1], (n_seg, D), jnp.float32)]
    train_u = [jax.random.normal(ks[2], (n_seg,), jnp.float32),
               jax.random.normal(ks[3], (n_seg,), jnp.float32)]
    train_y = [jax.random.normal(ks[4], (n_seg,), jnp.float32),
               jax.random.normal(ks[5], (n_seg,), jnp.float32)]

    x = jax.random.normal(ks[6], (M, D), jnp.float32)
    u = jax.random.normal(ks[7], (M,), jnp.float32)

    model = LinearizingControl3(train_x, train_u, train_y)
    mean, cov = model.forward(x, u)
    jax.block_until_ready((mean, cov))

    assert mean.shape == (M,) and cov.shape == (M, M)
    assert bool(jnp.all(jnp.isfinite(mean))) and bool(jnp.all(jnp.isfinite(cov)))

    ref_mean, ref_cov = _reference_forward(model, x, u)
    assert bool(jnp.allclose(mean, ref_mean, rtol=2e-3, atol=2e-3))
    assert bool(jnp.allclose(cov, ref_cov, rtol=2e-3, atol=2e-3))
    print("KERNEL_OK")
</pallas_src>

<mosaic_0001>
module attributes {stable_mosaic.version = 11 : i64} {
  func.func @kernel(%arg0: memref<2x16xf32, #tpu.memory_space<vmem>>, %arg1: memref<16x17xf32, #tpu.memory_space<vmem>>, %arg2: memref<8x3xf32, #tpu.memory_space<vmem>>, %arg3: memref<3x8xf32, #tpu.memory_space<vmem>>, %arg4: memref<8x9xf32, #tpu.memory_space<vmem>>) attributes {dimension_semantics = [], scalar_prefetch = 0 : i64, scratch_operands = 0 : i64, tpu.core_type = #tpu.core_type<tc>} {
    %c0 = arith.constant 0 : index
    %c0_0 = arith.constant 0 : index
    %0 = vector.load %arg0[%c0, %c0_0] : memref<2x16xf32, #tpu.memory_space<vmem>>, vector<2x16xf32>
    %c0_1 = arith.constant 0 : index
    %c0_2 = arith.constant 0 : index
    %1 = vector.load %arg2[%c0_1, %c0_2] : memref<8x3xf32, #tpu.memory_space<vmem>>, vector<8x3xf32>
    %c0_3 = arith.constant 0 : index
    %c0_4 = arith.constant 0 : index
    %2 = vector.load %arg3[%c0_3, %c0_4] : memref<3x8xf32, #tpu.memory_space<vmem>>, vector<3x8xf32>
    %3 = vector.extract_strided_slice %1 {offsets = [0, 0], sizes = [8, 1], strides = [1, 1]} : vector<8x3xf32> to vector<8x1xf32>
    %4 = vector.extract_strided_slice %0 {offsets = [0, 0], sizes = [1, 16], strides = [1, 1]} : vector<2x16xf32> to vector<1x16xf32>
    %5 = vector.broadcast %3 : vector<8x1xf32> to vector<8x16xf32>
    %6 = vector.broadcast %4 : vector<1x16xf32> to vector<8x16xf32>
    %7 = arith.subf %5, %6 : vector<8x16xf32>
    %8 = arith.mulf %7, %7 : vector<8x16xf32>
    %9 = vector.extract_strided_slice %1 {offsets = [0, 1], sizes = [8, 1], strides = [1, 1]} : vector<8x3xf32> to vector<8x1xf32>
    %10 = vector.extract_strided_slice %0 {offsets = [1, 0], sizes = [1, 16], strides = [1, 1]} : vector<2x16xf32> to vector<1x16xf32>
    %11 = vector.broadcast %9 : vector<8x1xf32> to vector<8x16xf32>
    %12 = vector.broadcast %10 : vector<1x16xf32> to vector<8x16xf32>
    %13 = arith.subf %11, %12 : vector<8x16xf32>
    %14 = arith.mulf %13, %13 : vector<8x16xf32>
    %15 = arith.addf %8, %14 : vector<8x16xf32>
    %cst = arith.constant 0.000000e+00 : f32
    %16 = vector.broadcast %cst : f32 to vector<8x16xf32>
    %17 = arith.subf %16, %15 : vector<8x16xf32>
    %cst_5 = arith.constant 1.04068446 : f32
    %18 = vector.broadcast %cst_5 : f32 to vector<8x16xf32>
    %19 = arith.mulf %17, %18 : vector<8x16xf32>
    %20 = math.exp %19 : vector<8x16xf32>
    %cst_6 = arith.constant 0.693147182 : f32
    %21 = vector.broadcast %cst_6 : f32 to vector<8x16xf32>
    %22 = arith.mulf %21, %20 : vector<8x16xf32>
    %23 = vector.extract_strided_slice %1 {offsets = [0, 0], sizes = [8, 1], strides = [1, 1]} : vector<8x3xf32> to vector<8x1xf32>
    %24 = vector.extract_strided_slice %2 {offsets = [0, 0], sizes = [1, 8], strides = [1, 1]} : vector<3x8xf32> to vector<1x8xf32>
    %25 = vector.broadcast %23 : vector<8x1xf32> to vector<8x8xf32>
    %26 = vector.broadcast %24 : vector<1x8xf32> to vector<8x8xf32>
    %27 = arith.subf %25, %26 : vector<8x8xf32>
    %28 = arith.mulf %27, %27 : vector<8x8xf32>
    %29 = vector.extract_strided_slice %1 {offsets = [0, 1], sizes = [8, 1], strides = [1, 1]} : vector<8x3xf32> to vector<8x1xf32>
    %30 = vector.extract_strided_slice %2 {offsets = [1, 0], sizes = [1, 8], strides = [1, 1]} : vector<3x8xf32> to vector<1x8xf32>
    %31 = vector.broadcast %29 : vector<8x1xf32> to vector<8x8xf32>
    %32 = vector.broadcast %30 : vector<1x8xf32> to vector<8x8xf32>
    %33 = arith.subf %31, %32 : vector<8x8xf32>
    %34 = arith.mulf %33, %33 : vector<8x8xf32>
    %35 = arith.addf %28, %34 : vector<8x8xf32>
    %cst_7 = arith.constant 0.000000e+00 : f32
    %36 = vector.broadcast %cst_7 : f32 to vector<8x8xf32>
    %37 = arith.subf %36, %35 : vector<8x8xf32>
    %cst_8 = arith.constant 1.04068446 : f32
    %38 = vector.broadcast %cst_8 : f32 to vector<8x8xf32>
    %39 = arith.mulf %37, %38 : vector<8x8xf32>
    %40 = math.exp %39 : vector<8x8xf32>
    %cst_9 = arith.constant 0.693147182 : f32
    %41 = vector.broadcast %cst_9 : f32 to vector<8x8xf32>
    %42 = arith.mulf %41, %40 : vector<8x8xf32>
    %c0_10 = arith.constant 0 : index
    %c0_11 = arith.constant 0 : index
    %43 = vector.load %arg1[%c0_10, %c0_11] : memref<16x17xf32, #tpu.memory_space<vmem>>, vector<16x17xf32>
    %cst_12 = arith.constant dense<0.000000e+00> : vector<8x17xf32>
    %44 = tpu.matmul %22, %43, %cst_12 {dimension_numbers = #tpu.dot_dimension_numbers<[1], [0], [0], [1], [0, 0, 1, 1], [], []>} : vector<8x16xf32>, vector<16x17xf32>, vector<8x17xf32> -> vector<8x17xf32>
    %45 = vector.extract_strided_slice %44 {offsets = [0, 0], sizes = [8, 16], strides = [1, 1]} : vector<8x17xf32> to vector<8x16xf32>
    %cst_13 = arith.constant dense<0.000000e+00> : vector<8x8xf32>
    %46 = tpu.matmul %45, %22, %cst_13 {dimension_numbers = #tpu.dot_dimension_numbers<[1], [1], [0], [0], [0, 0, 1, 0], [], []>} : vector<8x16xf32>, vector<8x16xf32>, vector<8x8xf32> -> vector<8x8xf32>
    %47 = arith.subf %42, %46 : vector<8x8xf32>
    %48 = vector.extract_strided_slice %44 {offsets = [0, 16], sizes = [8, 1], strides = [1, 1]} : vector<8x17xf32> to vector<8x1xf32>
    %49 = vector.extract_strided_slice %1 {offsets = [0, 2], sizes = [8, 1], strides = [1, 1]} : vector<8x3xf32> to vector<8x1xf32>
    %50 = vector.extract_strided_slice %2 {offsets = [2, 0], sizes = [1, 8], strides = [1, 1]} : vector<3x8xf32> to vector<1x8xf32>
    %51 = tpu.iota {dimensions = array<i32: 0>} : vector<8x8xi32>
    %52 = tpu.iota {dimensions = array<i32: 1>} : vector<8x8xi32>
    %53 = arith.cmpi eq, %51, %52 : vector<8x8xi32>
    %cst_14 = arith.constant 9.99999993E-9 : f32
    %cst_15 = arith.constant 0.000000e+00 : f32
    %54 = vector.broadcast %cst_14 : f32 to vector<8x8xf32>
    %55 = vector.broadcast %cst_15 : f32 to vector<8x8xf32>
    %56 = arith.select %53, %54, %55 : vector<8x8xi1>, vector<8x8xf32>
    %57 = vector.broadcast %49 : vector<8x1xf32> to vector<8x8xf32>
    %58 = vector.broadcast %50 : vector<1x8xf32> to vector<8x8xf32>
    %59 = arith.mulf %57, %58 : vector<8x8xf32>
    %cst_16 = arith.constant 0.0407789946 : f32
    %60 = vector.broadcast %cst_16 : f32 to vector<8x8xf32>
    %61 = arith.mulf %59, %60 : vector<8x8xf32>
    %62 = arith.addf %61, %47 : vector<8x8xf32>
    %63 = arith.addf %62, %56 : vector<8x8xf32>
    %c0_17 = arith.constant 0 : index
    %c0_18 = arith.constant 0 : index
    %64 = vector.load %arg4[%c0_17, %c0_18] : memref<8x9xf32, #tpu.memory_space<vmem>>, vector<8x8xf32>
    tpu.vector_store %arg4[%c0_17, %c0_18], %63 {strides = array<i32>} : memref<8x9xf32, #tpu.memory_space<vmem>>, vector<8x8xf32>,
    %cst_19 = arith.constant 0.181912169 : f32
    %65 = vector.broadcast %cst_19 : f32 to vector<8x1xf32>
    %66 = arith.mulf %65, %49 : vector<8x1xf32>
    %67 = arith.addf %48, %66 : vector<8x1xf32>
    %c0_20 = arith.constant 0 : index
    %c8 = arith.constant 8 : index
    %68 = vector.load %arg4[%c0_20, %c8] : memref<8x9xf32, #tpu.memory_space<vmem>>, vector<8x1xf32>
    tpu.vector_store %arg4[%c0_20, %c8], %67 {strides = array<i32>} : memref<8x9xf32, #tpu.memory_space<vmem>>, vector<8x1xf32>,
    return
  }
}

</mosaic_0001>

<llo_original>
// kernel: _fused_forward.1
$region0: #{_fused_forward.1}
  #allocation0 [shape = 'u32[]', space=smem, size = 0x4, offset = 0x4, fixed_abs, tag = 'smem constant byte address 0x4 - core index']
  #allocation1 [shape = 'u32[144,128]{1,0:T(1,128)}', space=vmem, size = 0x12000, scoped, tag = 'internal scratch']
  %s0 = inlined_call_operand.vmem [shape: f32[2,16], index: 0, kind: input, shape index: {}]
  %s1 = inlined_call_operand.vmem [shape: f32[16,17], index: 1, kind: input, shape index: {}]
  %s2 = inlined_call_operand.vmem [shape: f32[8,3], index: 2, kind: input, shape index: {}]
  %s3 = inlined_call_operand.vmem [shape: f32[3,8], index: 3, kind: input, shape index: {}]
  %s4 = inlined_call_operand.vmem [shape: f32[8,9], index: 4, kind: output, shape index: {}]
  %s5 = sld [smem:[#allocation0]]
  $region26: #{_fused_forward.1} parent=0
    _
  %s7 = ssub.s32 1, %s5
  %s8 = scalar_select 0, %s7, %s5
  // Predicated region
  $region2: #{_fused_forward.1} parent=0 // pred_check
    _
  $region3: #{_fused_forward.1} parent=0 // pred_check_branch
    %10 = sbr.rel (0) target = $region5
  $region4: #{_fused_forward.1} parent=0 // pred_region
    _
  $region5: #{_fused_forward.1} parent=0 // pred_fallthru
    _
  // Predicated region
  $region6: #{_fused_forward.1} parent=0 // pred_check
    _
  $region7: #{_fused_forward.1} parent=0 // pred_check_branch
    %12 = sbr.rel (0) target = $region9
  $region8: #{_fused_forward.1} parent=0 // pred_region
    _
  $region9: #{_fused_forward.1} parent=0 // pred_fallthru
    _
  // Predicated region
  $region10: #{_fused_forward.1} parent=0 // pred_check
    _
  $region11: #{_fused_forward.1} parent=0 // pred_check_branch
    %14 = sbr.rel (0) target = $region13
  $region12: #{_fused_forward.1} parent=0 // pred_region
    _
  $region13: #{_fused_forward.1} parent=0 // pred_fallthru
    _
  // Predicated region
  $region14: #{_fused_forward.1} parent=0 // pred_check
    _
  $region15: #{_fused_forward.1} parent=0 // pred_check_branch
    %16 = sbr.rel (0) target = $region17
  $region16: #{_fused_forward.1} parent=0 // pred_region
    _
  $region17: #{_fused_forward.1} parent=0 // pred_fallthru
    _
  %v17 = vld [vmem:[%s0] sm:$0x3]
  %v18 = vld [vmem:[%s2] sm:$0xff]
  %v19 = vld [vmem:[%s3] sm:$0x7]
  %21 = vset.pattern.permute.xlu0 0
  %22 = vperm.xlu0 %21, %v18
  %v23 = vpop.permute.xlu0 %22
  %v25 = vlaneseq
  %v26 = vshrl.u32 %v25, 7
  %v27 = vsub.s32 0, %v26
  %v28 = vrot.slane %v17, %v27
  %v29 = vsub.f32 %v23, %v28
  %v30 = vmul.f32 %v29, %v29
  %31 = vset.pattern.permute.xlu0 1
  %32 = vperm.xlu0 %31, %v18
  %v33 = vpop.permute.xlu0 %32
  %v35 = vlaneseq
  %v36 = vshrl.u32 %v35, 7
  %v37 = vsub.s32 1, %v36
  %v38 = vrot.slane %v17, %v37
  %v39 = vsub.f32 %v33, %v38
  %v40 = vmul.f32 %v39, %v39
  %v41 = vadd.f32 %v30, %v40
  %v42 = vsub.f32 0.0, %v41
  %v43 = vmul.f32 %v42, 1.0406845
  %v44 = vmul.f32 %v43, 1.442695
  %v45 = vpow.pop %v44
  %v46 = vmul.f32 %v45, 0.6931472
  %v47 = vlaneseq
  %v48 = vshrl.u32 %v47, 7
  %v49 = vsub.s32 0, %v48
  %v50 = vrot.slane %v19, %v49
  %v51 = vsub.f32 %v23, %v50
  %v52 = vmul.f32 %v51, %v51
  %v53 = vlaneseq
  %v54 = vshrl.u32 %v53, 7
  %v55 = vsub.s32 1, %v54
  %v56 = vrot.slane %v19, %v55
  %v57 = vsub.f32 %v33, %v56
  %v58 = vmul.f32 %v57, %v57
  %v59 = vadd.f32 %v52, %v58
  %v60 = vsub.f32 0.0, %v59
  %v61 = vmul.f32 %v60, 1.0406845
  %v62 = vmul.f32 %v61, 1.442695
  %v63 = vpow.pop %v62
  %v64 = vmul.f32 %v63, 0.6931472
  %v65 = vld [vmem:[%s1] sm:$0xff]
  %v66 = vld [vmem:[%s1 + $0x8] sm:$0xff]
  %vm67 = vcmask 130048
  %v69 = vsel %vm67, %v46, 0
  %71 = vmatprep.subr.mxu0 0.0
  %72 = vmatpush1.msra.mxu0 %v65
  %73 = vmatprep.subr.mxu0 0.0
  %74 = vmatpush1.msra.mxu0 %v66
  %75 = vmatprep.subr.mxu0 0.0
  %76 = vmatpush1.msra.mxu0 0.0
  %77 = vmatprep.subr.mxu0 0.0
  %78 = vmatpush1.msra.mxu0 0.0
  %79 = vmatprep.subr.mxu0 0.0
  %80 = vmatpush1.msra.mxu0 0.0
  %81 = vmatprep.subr.mxu0 0.0
  %82 = vmatpush1.msra.mxu0 0.0
  %83 = vmatprep.subr.mxu0 0.0
  %84 = vmatpush1.msra.mxu0 0.0
  %85 = vmatprep.subr.mxu0 0.0
  %86 = vmatpush1.msra.mxu0 0.0
  %87 = vmatprep.subr.mxu0 0.0
  %88 = vmatpush1.msra.mxu0 0.0
  %89 = vmatprep.subr.mxu0 0.0
  %90 = vmatpush1.msra.mxu0 0.0
  %91 = vmatprep.subr.mxu0 0.0
  %92 = vmatpush1.msra.mxu0 0.0
  %93 = vmatprep.subr.mxu0 0.0
  %94 = vmatpush1.msra.mxu0 0.0
  %95 = vmatprep.subr.mxu0 0.0
  %96 = vmatpush1.msra.mxu0 0.0
  %97 = vmatprep.subr.mxu0 0.0
  %98 = vmatpush1.msra.mxu0 0.0
  %99 = vmatprep.subr.mxu0 0.0
  %100 = vmatpush1.msra.mxu0 0.0
  %101 = vmatprep.subr.mxu0 0.0
  %102 = vmatpush1.msra.mxu0 0.0
  %103 = vmatprep.subr.mxu0 0.0
  %104 = vmatpush1.msra.mxu0 0.0
  %105 = vmatprep.subr.mxu0 0.0
  %106 = vmatpush1.msra.mxu0 0.0
  %107 = vmatprep.subr.mxu0 0.0
  %108 = vmatpush1.msra.mxu0 0.0
  %109 = vmatprep.subr.mxu0 0.0
  %110 = vmatpush1.msra.mxu0 0.0
  %111 = vmatprep.subr.mxu0 0.0
  %112 = vmatpush1.msra.mxu0 0.0
  %113 = vmatprep.subr.mxu0 0.0
  %114 = vmatpush1.msra.mxu0 0.0
  %115 = vmatprep.subr.mxu0 0.0
  %116 = vmatpush1.msra.mxu0 0.0
  %117 = vmatprep.subr.mxu0 0.0
  %118 = vmatpush1.msra.mxu0 0.0
  %119 = vmatprep.subr.mxu0 0.0
  %120 = vmatpush1.msra.mxu0 0.0
  %121 = vmatprep.subr.mxu0 0.0
  %122 = vmatpush1.msra.mxu0 0.0
  %123 = vmatprep.subr.mxu0 0.0
  %124 = vmatpush1.msra.mxu0 0.0
  %125 = vmatprep.subr.mxu0 0.0
  %126 = vmatpush1.msra.mxu0 0.0
  %127 = vmatprep.subr.mxu0 0.0
  %128 = vmatpush1.msra.mxu0 0.0
  %129 = vmatprep.subr.mxu0 0.0
  %130 = vmatpush1.msra.mxu0 0.0
  %131 = vmatprep.subr.mxu0 0.0
  %132 = vmatpush1.msra.mxu0 0.0
  %133 = vmatprep.subr.mxu0 0.0
  %134 = vmatpush1.msra.mxu0 0.0
  %135 = vmatprep.mubr.f32.mxu0 0.0
  %136 = vmatmul.mubr.f32.gmra.mrb[0].mxu0 %v69
  %v137 = vpop.f32.mrb[0].mxu0
  %v138 = vadd.f32 0.0, %v137
  %v139 = vpop.f32.mrb[0].mxu0
  %140 = vdwg.mxu0
  %v142 = vsel %vm67, %v138, 0
  %144 = vmatprep.subr.mxu0 0.0
  %145 = vmatpush1.xpose.msra.mxu0 %v69
  %146 = vmatprep.subr.mxu0 0.0
  %147 = vmatpush1.xpose.msra.mxu0 0.0
  %148 = vmatprep.subr.mxu0 0.0
  %149 = vmatpush1.xpose.msra.mxu0 0.0
  %150 = vmatprep.subr.mxu0 0.0
  %151 = vmatpush1.xpose.msra.mxu0 0.0
  %152 = vmatprep.subr.mxu0 0.0
  %153 = vmatpush1.xpose.msra.mxu0 0.0
  %154 = vmatprep.subr.mxu0 0.0
  %155 = vmatpush1.xpose.msra.mxu0 0.0
  %156 = vmatprep.subr.mxu0 0.0
  %157 = vmatpush1.xpose.msra.mxu0 0.0
  %158 = vmatprep.subr.mxu0 0.0
  %159 = vmatpush1.xpose.msra.mxu0 0.0
  %160 = vmatprep.subr.mxu0 0.0
  %161 = vmatpush1.xpose.msra.mxu0 0.0
  %162 = vmatprep.subr.mxu0 0.0
  %163 = vmatpush1.xpose.msra.mxu0 0.0
  %164 = vmatprep.subr.mxu0 0.0
  %165 = vmatpush1.xpose.msra.mxu0 0.0
  %166 = vmatprep.subr.mxu0 0.0
  %167 = vmatpush1.xpose.msra.mxu0 0.0
  %168 = vmatprep.subr.mxu0 0.0
  %169 = vmatpush1.xpose.msra.mxu0 0.0
  %170 = vmatprep.subr.mxu0 0.0
  %171 = vmatpush1.xpose.msra.mxu0 0.0
  %172 = vmatprep.subr.mxu0 0.0
  %173 = vmatpush1.xpose.msra.mxu0 0.0
  %174 = vmatprep.subr.mxu0 0.0
  %175 = vmatpush1.xpose.msra.mxu0 0.0
  %176 = vmatprep.subr.mxu0 0.0
  %177 = vmatpush1.xpose.msra.mxu0 0.0
  %178 = vmatprep.subr.mxu0 0.0
  %179 = vmatpush1.xpose.msra.mxu0 0.0
  %180 = vmatprep.subr.mxu0 0.0
  %181 = vmatpush1.xpose.msra.mxu0 0.0
  %182 = vmatprep.subr.mxu0 0.0
  %183 = vmatpush1.xpose.msra.mxu0 0.0
  %184 = vmatprep.subr.mxu0 0.0
  %185 = vmatpush1.xpose.msra.mxu0 0.0
  %186 = vmatprep.subr.mxu0 0.0
  %187 = vmatpush1.xpose.msra.mxu0 0.0
  %188 = vmatprep.subr.mxu0 0.0
  %189 = vmatpush1.xpose.msra.mxu0 0.0
  %190 = vmatprep.subr.mxu0 0.0
  %191 = vmatpush1.xpose.msra.mxu0 0.0
  %192 = vmatprep.subr.mxu0 0.0
  %193 = vmatpush1.xpose.msra.mxu0 0.0
  %194 = vmatprep.subr.mxu0 0.0
  %195 = vmatpush1.xpose.msra.mxu0 0.0
  %196 = vmatprep.subr.mxu0 0.0
  %197 = vmatpush1.xpose.msra.mxu0 0.0
  %198 = vmatprep.subr.mxu0 0.0
  %199 = vmatpush1.xpose.msra.mxu0 0.0
  %200 = vmatprep.subr.mxu0 0.0
  %201 = vmatpush1.xpose.msra.mxu0 0.0
  %202 = vmatprep.subr.mxu0 0.0
  %203 = vmatpush1.xpose.msra.mxu0 0.0
  %204 = vmatprep.subr.mxu0 0.0
  %205 = vmatpush1.xpose.msra.mxu0 0.0
  %206 = vmatprep.subr.mxu0 0.0
  %207 = vmatpush1.xpose.msra.mxu0 0.0
  %208 = vmatprep.mubr.f32.mxu0 0.0
  %209 = vmatmul.mubr.f32.gmra.mrb[0].mxu0 %v142
  %v210 = vpop.f32.mrb[0].mxu0
  %v211 = vadd.f32 0.0, %v210
  %v212 = vpop.f32.mrb[0].mxu0
  %213 = vdwg.mxu0
  %v214 = vsub.f32 %v64, %v211
  %v215 = vlaneseq
  %v216 = vshrl.u32 %v215, 7
  %v217 = vlaneseq
  %v218 = vand.u32 %v217, 127
  %vm219 = vcmp.eq.s32.totalorder %v216, %v218
  %v220 = vsel %vm219, 1e-08, 0.0
  %221 = vset.pattern.permute.xlu0 2
  %222 = vperm.xlu0 %221, %v18
  %v223 = vpop.permute.xlu0 %222
  %v225 = vlaneseq
  %v226 = vshrl.u32 %v225, 7
  %v227 = vsub.s32 2, %v226
  %v228 = vrot.slane %v19, %v227
  %v229 = vmul.f32 %v223, %v228
  %v230 = vmul.f32 %v229, 0.040778995
  %v231 = vadd.f32 %v230, %v214
  %v232 = vadd.f32 %v231, %v220
  %vm233 = vcmask 64512
  %234 = vst.msk [vmem:[%s4] sm:$0xff] %vm233, %v232
  %v235 = vmul.f32 %v18, 0.18191217
  %237 = vrot.lane.b32.xlu0 %v235, 14
  %v238 = vpop.permute.xlu0 %237
  %v240 = vadd.f32 %v138, %v238
  %242 = vrot.lane.b32.xlu0 %v240, 120
  %v243 = vpop.permute.xlu0 %242
  %vm245 = vcmask 72768
  %246 = vst.msk [vmem:[%s4] sm:$0xff] %vm245, %v243
  // Predicated region
  $region18: #{_fused_forward.1} parent=0 // pred_check
    _
  $region19: #{_fused_forward.1} parent=0 // pred_check_branch
    %248 = sbr.rel (0) target = $region21
  $region20: #{_fused_forward.1} parent=0 // pred_region
    _
  $region21: #{_fused_forward.1} parent=0 // pred_fallthru
    _
  // Predicated region
  $region22: #{_fused_forward.1} parent=0 // pred_check
    _
  $region23: #{_fused_forward.1} parent=0 // pred_check_branch
    %250 = sbr.rel (0) target = $region25
  $region24: #{_fused_forward.1} parent=0 // pred_region
    _
  $region25: #{_fused_forward.1} parent=0 // pred_fallthru
    _

</llo_original>
